<compile_context>
chip_gen: v5e
topology: v5e:2x2
jax: 0.10.0
libtpu: 0.0.40
codegen_flags: <defaults>
</compile_context>

<pallas_src>
import functools

import jax
import jax.numpy as jnp
from jax.experimental import pallas as pl
from jax.experimental.pallas import tpu as pltpu


def _fused_mlp_kernel(*refs, n_args, n_layers, slope):
    """Whole Linear+LeakyReLU stack on one row-tile of the batch.

    refs layout:
      [arg_0 .. arg_{A-1},                      # input activations (row tile)
       w1_0 .. w1_{A-1}, b1,                    # first layer, weight split per arg
       w2, b2, ..., wL, bL,                     # remaining layers (lane-padded)
       out]                                     # lane-padded output row tile
    """
    arg_refs = refs[:n_args]
    w1_refs = refs[n_args:2 * n_args]
    b1_ref = refs[2 * n_args]
    rest = refs[2 * n_args + 1:-1]
    out_ref = refs[-1]

    # ---- layer 0: hstack folded into a sum of per-arg partial matmuls ----------
    h = jnp.dot(arg_refs[0][...], w1_refs[0][...],
                preferred_element_type=jnp.float32)
    for a_ref, w_ref in zip(arg_refs[1:], w1_refs[1:]):
        h = h + jnp.dot(a_ref[...], w_ref[...],
                        preferred_element_type=jnp.float32)
    h = h + b1_ref[...]                               # (1, N_pad) broadcasts
    if n_layers > 1:
        h = jnp.where(h > 0, h, slope * h)            # LeakyReLU (default 0.01)

    # ---- remaining layers: activation never leaves VMEM ------------------------
    for li in range(1, n_layers):
        w_ref = rest[2 * (li - 1)]
        b_ref = rest[2 * (li - 1) + 1]
        h = jnp.dot(h.astype(w_ref.dtype), w_ref[...],
                    preferred_element_type=jnp.float32)
        h = h + b_ref[...]
        if li != n_layers - 1:
            h = jnp.where(h > 0, h, slope * h)

    out_ref[...] = h.astype(out_ref.dtype)


def _round_up(x, m):
    return ((x + m - 1) // m) * m


def mlp_forward_pallas(params, *args, compute_dtype=jnp.float32, block_m=256,
                       negative_slope=0.01):
    """Equivalent of MLP.forward(*args): hstack inputs, then Linear/LeakyReLU stack."""
    n_layers = len(params)
    n_args = len(args)
    M = int(args[0].shape[0])
    arg_widths = [int(a.shape[1]) for a in args]
    in_features = sum(arg_widths)
    assert int(params[0][0].shape[0]) == in_features
    out_features = int(params[-1][0].shape[1])

    # Lane-pad every layer's output width to a multiple of 128 (lane-dense HBM I/O).
    n_pads = [_round_up(int(w.shape[1]), 128) for (w, _) in params]

    # --- pad & split parameters (cheap; in real use precompute once) -------------
    w1, b1 = params[0]
    w1_blocks, off = [], 0
    for d in arg_widths:
        blk = jnp.pad(w1[off:off + d, :], ((0, 0), (0, n_pads[0] - w1.shape[1])))
        w1_blocks.append(blk.astype(compute_dtype))
        off += d
    b1p = jnp.pad(b1, (0, n_pads[0] - b1.shape[0])).reshape(1, -1).astype(jnp.float32)

    rest = []
    for li in range(1, n_layers):
        w, b = params[li]
        kp, npd = n_pads[li - 1], n_pads[li]
        wp = jnp.pad(w, ((0, kp - w.shape[0]), (0, npd - w.shape[1]))).astype(compute_dtype)
        bp = jnp.pad(b, (0, npd - b.shape[0])).reshape(1, -1).astype(jnp.float32)
        rest += [wp, bp]

    # --- batch tiling: pad M to a multiple of the row tile ------------------------
    m8 = _round_up(M, 8)
    tm = min(m8, block_m)
    m_pad = _round_up(m8, tm)
    grid_m = m_pad // tm
    args_p = [jnp.pad(a, ((0, m_pad - M), (0, 0))).astype(compute_dtype) for a in args]

    n_out_pad = n_pads[-1]

    # --- BlockSpecs ----------------------------------------------------------------
    arg_specs = [pl.BlockSpec((tm, d), lambda m: (m, 0)) for d in arg_widths]
    w1_specs = [pl.BlockSpec(tuple(wb.shape), lambda m: (0, 0)) for wb in w1_blocks]
    b1_spec = pl.BlockSpec(tuple(b1p.shape), lambda m: (0, 0))
    rest_specs = [pl.BlockSpec(tuple(t.shape), lambda m: (0, 0)) for t in rest]
    out_spec = pl.BlockSpec((tm, n_out_pad), lambda m: (m, 0))

    # --- cost estimate: helps XLA overlap the custom call ---------------------------
    flops = 2 * m_pad * (sum(d * n_pads[0] for d in arg_widths)
                         + sum(n_pads[l - 1] * n_pads[l] for l in range(1, n_layers)))
    bytes_accessed = (sum(a.size * a.dtype.itemsize for a in args_p)
                      + sum(t.size * t.dtype.itemsize
                            for t in (w1_blocks + [b1p] + rest))
                      + m_pad * n_out_pad * 4)
    cost = pl.CostEstimate(flops=int(flops), transcendentals=0,
                           bytes_accessed=int(bytes_accessed))

    kernel = functools.partial(_fused_mlp_kernel, n_args=n_args,
                               n_layers=n_layers, slope=negative_slope)

    out_padded = pl.pallas_call(
        kernel,
        out_shape=jax.ShapeDtypeStruct((m_pad, n_out_pad), jnp.float32),
        grid=(grid_m,),
        in_specs=arg_specs + w1_specs + [b1_spec] + rest_specs,
        out_specs=out_spec,
        compiler_params=pltpu.CompilerParams(
            # Row tiles are independent -> shard across TensorCores on v7x megacore.
            dimension_semantics=("parallel",),
        ),
        cost_estimate=cost,
    )(*args_p, *w1_blocks, b1p, *rest)

    return out_padded[:M, :out_features]


def init_mlp_params(key, input_size, h_sizes, output_size):
    """Deterministic init mimicking torch.nn.Linear default U[-1/sqrt(fan_in), 1/sqrt(fan_in)]."""
    sizes = [input_size] + list(h_sizes) + [output_size]
    params = []
    for i in range(len(sizes) - 1):
        fan_in, fan_out = sizes[i], sizes[i + 1]
        key, kw, kb = jax.random.split(key, 3)
        bound = 1.0 / jnp.sqrt(jnp.float32(fan_in))
        w = jax.random.uniform(kw, (fan_in, fan_out), jnp.float32, -bound, bound)
        b = jax.random.uniform(kb, (fan_out,), jnp.float32, -bound, bound)
        params.append((w, b))
    return params


def mlp_reference(params, *args, compute_dtype=jnp.float32, negative_slope=0.01):
    """Pure-JAX reference mirroring the kernel's compute dtype."""
    x = jnp.concatenate(args, axis=1)
    n_layers = len(params)
    for li, (w, b) in enumerate(params):
        x = jnp.dot(x.astype(compute_dtype), w.astype(compute_dtype),
                    preferred_element_type=jnp.float32) + b
        if li != n_layers - 1:
            x = jnp.where(x > 0, x, negative_slope * x)
    return x


if __name__ == "__main__":
    key = jax.random.PRNGKey(0)
    k_params, k_a, k_b = jax.random.split(key, 3)

    # Two input args hstacked -> input_size = 16 + 16 = 32; MLP 32 -> 64 -> 32 -> 16.
    batch = 64
    h_sizes = [64, 32]
    output_size = 16
    a = jax.random.normal(k_a, (batch, 16), jnp.float32)
    b = jax.random.normal(k_b, (batch, 16), jnp.float32)

    params = init_mlp_params(k_params, input_size=32, h_sizes=h_sizes,
                             output_size=output_size)

    # f32 compute path; block_m=32 so the parallel row-tile grid actually has 2 steps.
    out = mlp_forward_pallas(params, a, b, compute_dtype=jnp.float32, block_m=32)
    out = jax.block_until_ready(out)
    ref = mlp_reference(params, a, b, compute_dtype=jnp.float32)
    assert out.shape == (batch, output_size)
    assert jnp.allclose(out, ref, atol=2e-2, rtol=2e-2), \
        float(jnp.max(jnp.abs(out - ref)))

    # bf16 compute path (v6e/v7x MXU-friendly), f32 accumulation/epilogue in-kernel.
    out_bf16 = mlp_forward_pallas(params, a, b, compute_dtype=jnp.bfloat16)
    out_bf16 = jax.block_until_ready(out_bf16)
    ref_bf16 = mlp_reference(params, a, b, compute_dtype=jnp.bfloat16)
    assert out_bf16.shape == (batch, output_size)
    assert jnp.allclose(out_bf16, ref_bf16, atol=5e-2, rtol=5e-2), \
        float(jnp.max(jnp.abs(out_bf16 - ref_bf16)))

    print("KERNEL_OK")
</pallas_src>

<mosaic_0001>
module attributes {stable_mosaic.version = 11 : i64} {
  func.func @_fused_mlp_kernel(%arg0: i32, %arg1: memref<32x16xf32, #tpu.memory_space<vmem>>, %arg2: memref<32x16xf32, #tpu.memory_space<vmem>>, %arg3: memref<16x128xf32, #tpu.memory_space<vmem>>, %arg4: memref<16x128xf32, #tpu.memory_space<vmem>>, %arg5: memref<1x128xf32, #tpu.memory_space<vmem>>, %arg6: memref<128x128xf32, #tpu.memory_space<vmem>>, %arg7: memref<1x128xf32, #tpu.memory_space<vmem>>, %arg8: memref<128x128xf32, #tpu.memory_space<vmem>>, %arg9: memref<1x128xf32, #tpu.memory_space<vmem>>, %arg10: memref<32x128xf32, #tpu.memory_space<vmem>>) attributes {dimension_semantics = [#tpu.dimension_semantics<parallel>], iteration_bounds = array<i64: 2>, scalar_prefetch = 0 : i64, scratch_operands = 0 : i64, tpu.core_type = #tpu.core_type<tc>, window_params = [{transform_indices = @transform_0, window_bounds = array<i64: 32, 16>}, {transform_indices = @transform_1, window_bounds = array<i64: 32, 16>}, {pipeline_mode = #tpu.pipeline_mode<synchronous>, transform_indices = @transform_2, window_bounds = array<i64: 16, 128>}, {pipeline_mode = #tpu.pipeline_mode<synchronous>, transform_indices = @transform_3, window_bounds = array<i64: 16, 128>}, {pipeline_mode = #tpu.pipeline_mode<synchronous>, transform_indices = @transform_4, window_bounds = array<i64: 1, 128>}, {pipeline_mode = #tpu.pipeline_mode<synchronous>, transform_indices = @transform_5, window_bounds = array<i64: 128, 128>}, {pipeline_mode = #tpu.pipeline_mode<synchronous>, transform_indices = @transform_6, window_bounds = array<i64: 1, 128>}, {pipeline_mode = #tpu.pipeline_mode<synchronous>, transform_indices = @transform_7, window_bounds = array<i64: 128, 128>}, {pipeline_mode = #tpu.pipeline_mode<synchronous>, transform_indices = @transform_8, window_bounds = array<i64: 1, 128>}, {transform_indices = @transform_9, window_bounds = array<i64: 32, 128>}]} {
    %c0 = arith.constant 0 : index
    %c0_0 = arith.constant 0 : index
    %0 = vector.load %arg1[%c0, %c0_0] : memref<32x16xf32, #tpu.memory_space<vmem>>, vector<32x16xf32>
    %c0_1 = arith.constant 0 : index
    %c0_2 = arith.constant 0 : index
    %1 = vector.load %arg3[%c0_1, %c0_2] : memref<16x128xf32, #tpu.memory_space<vmem>>, vector<16x128xf32>
    %cst = arith.constant dense<0.000000e+00> : vector<32x128xf32>
    %2 = tpu.matmul %0, %1, %cst {dimension_numbers = #tpu.dot_dimension_numbers<[1], [0], [0], [1], [0, 0, 1, 1], [], []>} : vector<32x16xf32>, vector<16x128xf32>, vector<32x128xf32> -> vector<32x128xf32>
    %c0_3 = arith.constant 0 : index
    %c0_4 = arith.constant 0 : index
    %3 = vector.load %arg2[%c0_3, %c0_4] : memref<32x16xf32, #tpu.memory_space<vmem>>, vector<32x16xf32>
    %c0_5 = arith.constant 0 : index
    %c0_6 = arith.constant 0 : index
    %4 = vector.load %arg4[%c0_5, %c0_6] : memref<16x128xf32, #tpu.memory_space<vmem>>, vector<16x128xf32>
    %cst_7 = arith.constant dense<0.000000e+00> : vector<32x128xf32>
    %5 = tpu.matmul %3, %4, %cst_7 {dimension_numbers = #tpu.dot_dimension_numbers<[1], [0], [0], [1], [0, 0, 1, 1], [], []>} : vector<32x16xf32>, vector<16x128xf32>, vector<32x128xf32> -> vector<32x128xf32>
    %6 = arith.addf %2, %5 : vector<32x128xf32>
    %c0_8 = arith.constant 0 : index
    %c0_9 = arith.constant 0 : index
    %7 = vector.load %arg5[%c0_8, %c0_9] : memref<1x128xf32, #tpu.memory_space<vmem>>, vector<1x128xf32>
    %8 = vector.broadcast %7 : vector<1x128xf32> to vector<32x128xf32>
    %9 = arith.addf %6, %8 : vector<32x128xf32>
    %cst_10 = arith.constant 0.000000e+00 : f32
    %10 = vector.broadcast %cst_10 : f32 to vector<32x128xf32>
    %11 = arith.cmpf ogt, %9, %10 : vector<32x128xf32>
    %cst_11 = arith.constant 0.00999999977 : f32
    %12 = vector.broadcast %cst_11 : f32 to vector<32x128xf32>
    %13 = arith.mulf %12, %9 : vector<32x128xf32>
    %14 = arith.select %11, %9, %13 : vector<32x128xi1>, vector<32x128xf32>
    %c0_12 = arith.constant 0 : index
    %c0_13 = arith.constant 0 : index
    %15 = vector.load %arg6[%c0_12, %c0_13] : memref<128x128xf32, #tpu.memory_space<vmem>>, vector<128x128xf32>
    %cst_14 = arith.constant dense<0.000000e+00> : vector<32x128xf32>
    %16 = tpu.matmul %14, %15, %cst_14 {dimension_numbers = #tpu.dot_dimension_numbers<[1], [0], [0], [1], [0, 0, 1, 1], [], []>} : vector<32x128xf32>, vector<128x128xf32>, vector<32x128xf32> -> vector<32x128xf32>
    %c0_15 = arith.constant 0 : index
    %c0_16 = arith.constant 0 : index
    %17 = vector.load %arg7[%c0_15, %c0_16] : memref<1x128xf32, #tpu.memory_space<vmem>>, vector<1x128xf32>
    %18 = vector.broadcast %17 : vector<1x128xf32> to vector<32x128xf32>
    %19 = arith.addf %16, %18 : vector<32x128xf32>
    %cst_17 = arith.constant 0.000000e+00 : f32
    %20 = vector.broadcast %cst_17 : f32 to vector<32x128xf32>
    %21 = arith.cmpf ogt, %19, %20 : vector<32x128xf32>
    %cst_18 = arith.constant 0.00999999977 : f32
    %22 = vector.broadcast %cst_18 : f32 to vector<32x128xf32>
    %23 = arith.mulf %22, %19 : vector<32x128xf32>
    %24 = arith.select %21, %19, %23 : vector<32x128xi1>, vector<32x128xf32>
    %c0_19 = arith.constant 0 : index
    %c0_20 = arith.constant 0 : index
    %25 = vector.load %arg8[%c0_19, %c0_20] : memref<128x128xf32, #tpu.memory_space<vmem>>, vector<128x128xf32>
    %cst_21 = arith.constant dense<0.000000e+00> : vector<32x128xf32>
    %26 = tpu.matmul %24, %25, %cst_21 {dimension_numbers = #tpu.dot_dimension_numbers<[1], [0], [0], [1], [0, 0, 1, 1], [], []>} : vector<32x128xf32>, vector<128x128xf32>, vector<32x128xf32> -> vector<32x128xf32>
    %c0_22 = arith.constant 0 : index
    %c0_23 = arith.constant 0 : index
    %27 = vector.load %arg9[%c0_22, %c0_23] : memref<1x128xf32, #tpu.memory_space<vmem>>, vector<1x128xf32>
    %28 = vector.broadcast %27 : vector<1x128xf32> to vector<32x128xf32>
    %29 = arith.addf %26, %28 : vector<32x128xf32>
    %c0_24 = arith.constant 0 : index
    %c0_25 = arith.constant 0 : index
    %30 = vector.load %arg10[%c0_24, %c0_25] : memref<32x128xf32, #tpu.memory_space<vmem>>, vector<32x128xf32>
    tpu.vector_store %arg10[%c0_24, %c0_25], %29 {strides = array<i32>} : memref<32x128xf32, #tpu.memory_space<vmem>>, vector<32x128xf32>,
    return
  }
  func.func @transform_0(%arg0: i32) -> (i32, i32) {
    %c0_i32 = arith.constant 0 : i32
    %c0_i32_0 = arith.constant 0 : i32
    return %arg0, %c0_i32 : i32, i32
  }
  func.func @transform_1(%arg0: i32) -> (i32, i32) {
    %c0_i32 = arith.constant 0 : i32
    %c0_i32_0 = arith.constant 0 : i32
    return %arg0, %c0_i32 : i32, i32
  }
  func.func @transform_2(%arg0: i32) -> (i32, i32) {
    %c0_i32 = arith.constant 0 : i32
    %c0_i32_0 = arith.constant 0 : i32
    %c0_i32_1 = arith.constant 0 : i32
    return %c0_i32, %c0_i32_0 : i32, i32
  }
  func.func @transform_3(%arg0: i32) -> (i32, i32) {
    %c0_i32 = arith.constant 0 : i32
    %c0_i32_0 = arith.constant 0 : i32
    %c0_i32_1 = arith.constant 0 : i32
    return %c0_i32, %c0_i32_0 : i32, i32
  }
  func.func @transform_4(%arg0: i32) -> (i32, i32) {
    %c0_i32 = arith.constant 0 : i32
    %c0_i32_0 = arith.constant 0 : i32
    %c0_i32_1 = arith.constant 0 : i32
    return %c0_i32, %c0_i32_0 : i32, i32
  }
  func.func @transform_5(%arg0: i32) -> (i32, i32) {
    %c0_i32 = arith.constant 0 : i32
    %c0_i32_0 = arith.constant 0 : i32
    %c0_i32_1 = arith.constant 0 : i32
    return %c0_i32, %c0_i32_0 : i32, i32
  }
  func.func @transform_6(%arg0: i32) -> (i32, i32) {
    %c0_i32 = arith.constant 0 : i32
    %c0_i32_0 = arith.constant 0 : i32
    %c0_i32_1 = arith.constant 0 : i32
    return %c0_i32, %c0_i32_0 : i32, i32
  }
  func.func @transform_7(%arg0: i32) -> (i32, i32) {
    %c0_i32 = arith.constant 0 : i32
    %c0_i32_0 = arith.constant 0 : i32
    %c0_i32_1 = arith.constant 0 : i32
    return %c0_i32, %c0_i32_0 : i32, i32
  }
  func.func @transform_8(%arg0: i32) -> (i32, i32) {
    %c0_i32 = arith.constant 0 : i32
    %c0_i32_0 = arith.constant 0 : i32
    %c0_i32_1 = arith.constant 0 : i32
    return %c0_i32, %c0_i32_0 : i32, i32
  }
  func.func @transform_9(%arg0: i32) -> (i32, i32) {
    %c0_i32 = arith.constant 0 : i32
    %c0_i32_0 = arith.constant 0 : i32
    return %arg0, %c0_i32 : i32, i32
  }
}

</mosaic_0001>

<llo_original>
// kernel: tpu_custom_call.1
$region0: #{tpu_custom_call.1}
  #allocation0 [shape = 'u32[]', space=smem, size = 0x4, offset = 0x4, fixed_abs, tag = 'smem constant byte address 0x4 - core index']
  #allocation1 [shape = 'u32[72,128]{1,0:T(1,128)}', space=vmem, size = 0x9000, scoped, tag = 'internal scratch']
  %s0 = inlined_call_operand.vmem [shape: f32[64,16], index: 0, kind: input, shape index: {}]
  %s1 = inlined_call_operand.vmem [shape: f32[64,16], index: 1, kind: input, shape index: {}]
  %s2 = inlined_call_operand.vmem [shape: f32[16,128], index: 2, kind: input, shape index: {}]
  %s3 = inlined_call_operand.vmem [shape: f32[16,128], index: 3, kind: input, shape index: {}]
  %s4 = inlined_call_operand.vmem [shape: f32[1,128], index: 4, kind: input, shape index: {}]
  %s5 = inlined_call_operand.vmem [shape: f32[128,128], index: 5, kind: input, shape index: {}]
  %s6 = inlined_call_operand.vmem [shape: f32[1,128], index: 6, kind: input, shape index: {}]
  %s7 = inlined_call_operand.hbm [shape: f32[128,128], index: 7, kind: input, shape index: {}]
  %s8 = inlined_call_operand.vmem [shape: f32[1,128], index: 8, kind: input, shape index: {}]
  %s9 = inlined_call_operand.hbm [shape: f32[64,128], index: 9, kind: output, shape index: {}]
  %s10 = sld [smem:[#allocation0]]
  $region73: #{tpu_custom_call.1} parent=0
    _
  %s12 = ssub.s32 1, %s10
  %s13 = scalar_select 0, %s12, %s10
  $region1: #{tpu_custom_call.1} parent=0
    #allocation2 [shape = 'u8[65536]{0}', space=vmem, size = 0x10000, scoped, tag = 'input window, operand 7, single buffered']
    #allocation3 [shape = 's32[2]{0}', space=sflag, size = 0x8, scoped, tag = 'scoped memory for tpu_custom_call.1']
    #allocation4 [shape = 's32[2]{0}', space=sflag, size = 0x8, scoped, tag = 'scoped memory for tpu_custom_call.1']
    #allocation5 [shape = 'u8[32768]{0}', space=vmem, size = 0x8000, scoped, tag = 'output window, operand 0']
    %14 = vsyncpa [#allocation3], 0
    %15 = vsyncpa [#allocation4], 0
    %s16 = scalar_lea.sflag [#allocation4], 1
    %17 = vsyncpa %s16, 0
    loop: start=0, step=1, limit=4
    $region2: #{tpu_custom_call.1} parent=1 // loop_pre_header
      _
    $region3: #{tpu_custom_call.1} parent=1 // loop_header
      %s19 = sphi 0, %s23
      %p20 = scmp.ge.s32.totalorder %s19, 4
      %s29 = sphi 0, %s31
      %s32 = sphi 0, %s29
      %s33 = sphi 0, %s32
      %s49 = sphi 0, %s33
      %s55 = sphi 0, %s57
      %s58 = sphi 0, %s55
      %s59 = sphi 0, %s58
      %s75 = sphi 0, %s59
      %s79 = sphi 0, %s79
      %s81 = sphi 0, %s79
      %s82 = sphi 0, %s81
      %s96 = sphi 0, %s82
      %s100 = sphi 0, %s100
      %s102 = sphi 0, %s100
      %s103 = sphi 0, %s102
      %s117 = sphi 0, %s103
      %s121 = sphi 0, %s121
      %s123 = sphi 0, %s121
      %s124 = sphi 0, %s123
      %s138 = sphi 0, %s124
      %s142 = sphi 0, %s142
      %s144 = sphi 0, %s142
      %s145 = sphi 0, %s144
      %s159 = sphi 0, %s145
      %s163 = sphi 0, %s163
      %s165 = sphi 0, %s163
      %s166 = sphi 0, %s165
      %s180 = sphi 0, %s166
      %s184 = sphi 0, %s184
      %s186 = sphi 0, %s184
      %s187 = sphi 0, %s186
      %s201 = sphi 0, %s187
      %s205 = sphi 0, %s205
      %s207 = sphi 0, %s205
      %s208 = sphi 0, %s207
      %s222 = sphi 0, %s208
      %s228 = sphi 0, %s230
      %s231 = sphi 0, %s228
      %s232 = sphi 0, %s231
      %s248 = sphi 0, %s232
    $region4: #{tpu_custom_call.1} parent=1 // loop_header_branch
      %22 = sbr.rel (%p20) target = $region8
    $region5: #{tpu_custom_call.1} parent=1 // loop_body
      %s24 = ssub.s32 %s19, 1
      %s25 = ssub.s32 %s19, 2
      %s26 = sadd.s32 %s19, 1
      %s27 = ssub.s32 %s19, %s26
      %p28 = scmp.eq.s32.totalorder %s27, 0
      %s30 = sadd.s32 %s29, 1
      %s31 = scalar_select %p28, %s29, %s30
      %p34 = pneg %p28
      %p35 = scmp.eq.s32.totalorder %s19, 1
      %p36 = por %p34, %p35
      %p37 = scmp.ne.s32.totalorder %s29, %s32
      %p38 = scmp.eq.s32.totalorder %s19, 0
      %p39 = por %p37, %p38
      %p40 = scmp.ne.s32.totalorder %s29, %s32
      %p41 = scmp.eq.s32.totalorder %s24, 1
      %p42 = por %p40, %p41
      %p43 = scmp.ne.s32.totalorder %s32, %s33
      %p44 = scmp.eq.s32.totalorder %s24, 0
      %p45 = por %p43, %p44
      %p46 = scmp.ne.s32.totalorder %s32, %s33
      %p47 = scmp.eq.s32.totalorder %s25, 1
      %p48 = por %p46, %p47
      %p50 = scmp.ne.s32.totalorder %s33, %s49
      %p51 = scmp.eq.s32.totalorder %s25, 0
      %p52 = por %p50, %p51
      %s53 = ssub.s32 %s19, %s26
      %p54 = scmp.eq.s32.totalorder %s53, 0
      %s56 = sadd.s32 %s55, 1
      %s57 = scalar_select %p54, %s55, %s56
      %p60 = pneg %p54
      %p61 = scmp.eq.s32.totalorder %s19, 1
      %p62 = por %p60, %p61
      %p63 = scmp.ne.s32.totalorder %s55, %s58
      %p64 = scmp.eq.s32.totalorder %s19, 0
      %p65 = por %p63, %p64
      %p66 = scmp.ne.s32.totalorder %s55, %s58
      %p67 = scmp.eq.s32.totalorder %s24, 1
      %p68 = por %p66, %p67
      %p69 = scmp.ne.s32.totalorder %s58, %s59
      %p70 = scmp.eq.s32.totalorder %s24, 0
      %p71 = por %p69, %p70
      %p72 = scmp.ne.s32.totalorder %s58, %s59
      %p73 = scmp.eq.s32.totalorder %s25, 1
      %p74 = por %p72, %p73
      %p76 = scmp.ne.s32.totalorder %s59, %s75
      %p77 = scmp.eq.s32.totalorder %s25, 0
      %p78 = por %p76, %p77
      %s80 = sadd.s32 %s79, 1
      %p83 = scmp.eq.s32.totalorder %s19, 1
      %p84 = scmp.ne.s32.totalorder %s79, %s81
      %p85 = scmp.eq.s32.totalorder %s19, 0
      %p86 = por %p84, %p85
      %p87 = scmp.ne.s32.totalorder %s79, %s81
      %p88 = scmp.eq.s32.totalorder %s24, 1
      %p89 = por %p87, %p88
      %p90 = scmp.ne.s32.totalorder %s81, %s82
      %p91 = scmp.eq.s32.totalorder %s24, 0
      %p92 = por %p90, %p91
      %p93 = scmp.ne.s32.totalorder %s81, %s82
      %p94 = scmp.eq.s32.totalorder %s25, 1
      %p95 = por %p93, %p94
      %p97 = scmp.ne.s32.totalorder %s82, %s96
      %p98 = scmp.eq.s32.totalorder %s25, 0
      %p99 = por %p97, %p98
      %s101 = sadd.s32 %s100, 1
      %p104 = scmp.eq.s32.totalorder %s19, 1
      %p105 = scmp.ne.s32.totalorder %s100, %s102
      %p106 = scmp.eq.s32.totalorder %s19, 0
      %p107 = por %p105, %p106
      %p108 = scmp.ne.s32.totalorder %s100, %s102
      %p109 = scmp.eq.s32.totalorder %s24, 1
      %p110 = por %p108, %p109
      %p111 = scmp.ne.s32.totalorder %s102, %s103
      %p112 = scmp.eq.s32.totalorder %s24, 0
      %p113 = por %p111, %p112
      %p114 = scmp.ne.s32.totalorder %s102, %s103
      %p115 = scmp.eq.s32.totalorder %s25, 1
      %p116 = por %p114, %p115
      %p118 = scmp.ne.s32.totalorder %s103, %s117
      %p119 = scmp.eq.s32.totalorder %s25, 0
      %p120 = por %p118, %p119
      %s122 = sadd.s32 %s121, 1
      %p125 = scmp.eq.s32.totalorder %s19, 1
      %p126 = scmp.ne.s32.totalorder %s121, %s123
      %p127 = scmp.eq.s32.totalorder %s19, 0
      %p128 = por %p126, %p127
      %p129 = scmp.ne.s32.totalorder %s121, %s123
      %p130 = scmp.eq.s32.totalorder %s24, 1
      %p131 = por %p129, %p130
      %p132 = scmp.ne.s32.totalorder %s123, %s124
      %p133 = scmp.eq.s32.totalorder %s24, 0
      %p134 = por %p132, %p133
      %p135 = scmp.ne.s32.totalorder %s123, %s124
      %p136 = scmp.eq.s32.totalorder %s25, 1
      %p137 = por %p135, %p136
      %p139 = scmp.ne.s32.totalorder %s124, %s138
      %p140 = scmp.eq.s32.totalorder %s25, 0
      %p141 = por %p139, %p140
      %s143 = sadd.s32 %s142, 1
      %p146 = scmp.eq.s32.totalorder %s19, 1
      %p147 = scmp.ne.s32.totalorder %s142, %s144
      %p148 = scmp.eq.s32.totalorder %s19, 0
      %p149 = por %p147, %p148
      %p150 = scmp.ne.s32.totalorder %s142, %s144
      %p151 = scmp.eq.s32.totalorder %s24, 1
      %p152 = por %p150, %p151
      %p153 = scmp.ne.s32.totalorder %s144, %s145
      %p154 = scmp.eq.s32.totalorder %s24, 0
      %p155 = por %p153, %p154
      %p156 = scmp.ne.s32.totalorder %s144, %s145
      %p157 = scmp.eq.s32.totalorder %s25, 1
      %p158 = por %p156, %p157
      %p160 = scmp.ne.s32.totalorder %s145, %s159
      %p161 = scmp.eq.s32.totalorder %s25, 0
      %p162 = por %p160, %p161
      %s164 = sadd.s32 %s163, 1
      %p167 = scmp.eq.s32.totalorder %s19, 1
      %p168 = scmp.ne.s32.totalorder %s163, %s165
      %p169 = scmp.eq.s32.totalorder %s19, 0
      %p170 = por %p168, %p169
      %p171 = scmp.ne.s32.totalorder %s163, %s165
      %p172 = scmp.eq.s32.totalorder %s24, 1
      %p173 = por %p171, %p172
      %p174 = scmp.ne.s32.totalorder %s165, %s166
      %p175 = scmp.eq.s32.totalorder %s24, 0
      %p176 = por %p174, %p175
      %p177 = scmp.ne.s32.totalorder %s165, %s166
      %p178 = scmp.eq.s32.totalorder %s25, 1
      %p179 = por %p177, %p178
      %p181 = scmp.ne.s32.totalorder %s166, %s180
      %p182 = scmp.eq.s32.totalorder %s25, 0
      %p183 = por %p181, %p182
      %s185 = sadd.s32 %s184, 1
      %p188 = scmp.eq.s32.totalorder %s19, 1
      %p189 = scmp.ne.s32.totalorder %s184, %s186
      %p190 = scmp.eq.s32.totalorder %s19, 0
      %p191 = por %p189, %p190
      %p192 = scmp.ne.s32.totalorder %s184, %s186
      %p193 = scmp.eq.s32.totalorder %s24, 1
      %p194 = por %p192, %p193
      %p195 = scmp.ne.s32.totalorder %s186, %s187
      %p196 = scmp.eq.s32.totalorder %s24, 0
      %p197 = por %p195, %p196
      %p198 = scmp.ne.s32.totalorder %s186, %s187
      %p199 = scmp.eq.s32.totalorder %s25, 1
      %p200 = por %p198, %p199
      %p202 = scmp.ne.s32.totalorder %s187, %s201
      %p203 = scmp.eq.s32.totalorder %s25, 0
      %p204 = por %p202, %p203
      %s206 = sadd.s32 %s205, 1
      %p209 = scmp.eq.s32.totalorder %s19, 1
      %p210 = scmp.ne.s32.totalorder %s205, %s207
      %p211 = scmp.eq.s32.totalorder %s19, 0
      %p212 = por %p210, %p211
      %p213 = scmp.ne.s32.totalorder %s205, %s207
      %p214 = scmp.eq.s32.totalorder %s24, 1
      %p215 = por %p213, %p214
      %p216 = scmp.ne.s32.totalorder %s207, %s208
      %p217 = scmp.eq.s32.totalorder %s24, 0
      %p218 = por %p216, %p217
      %p219 = scmp.ne.s32.totalorder %s207, %s208
      %p220 = scmp.eq.s32.totalorder %s25, 1
      %p221 = por %p219, %p220
      %p223 = scmp.ne.s32.totalorder %s208, %s222
      %p224 = scmp.eq.s32.totalorder %s25, 0
      %p225 = por %p223, %p224
      %s226 = ssub.s32 %s19, %s26
      %p227 = scmp.eq.s32.totalorder %s226, 0
      %s229 = sadd.s32 %s228, 1
      %s230 = scalar_select %p227, %s228, %s229
      %p233 = pneg %p227
      %p234 = scmp.eq.s32.totalorder %s19, 1
      %p235 = por %p233, %p234
      %p236 = scmp.ne.s32.totalorder %s228, %s231
      %p237 = scmp.eq.s32.totalorder %s19, 0
      %p238 = por %p236, %p237
      %p239 = scmp.ne.s32.totalorder %s228, %s231
      %p240 = scmp.eq.s32.totalorder %s24, 1
      %p241 = por %p239, %p240
      %p242 = scmp.ne.s32.totalorder %s231, %s232
      %p243 = scmp.eq.s32.totalorder %s24, 0
      %p244 = por %p242, %p243
      %p245 = scmp.ne.s32.totalorder %s231, %s232
      %p246 = scmp.eq.s32.totalorder %s25, 1
      %p247 = por %p245, %p246
      %p249 = scmp.ne.s32.totalorder %s232, %s248
      %p250 = scmp.eq.s32.totalorder %s25, 0
      %p251 = por %p249, %p250
      %p252 = scmp.le.s32.totalorder 1, %s19
      %p253 = scmp.lt.s32.totalorder %s19, 3
      %p254 = pnand %p252, %p253
      %p255 = pneg %p254
      // Predicated region
      $region9: #{tpu_custom_call.1} parent=5 // pred_check
        _
      $region10: #{tpu_custom_call.1} parent=5 // pred_check_branch
        %257 = sbr.rel (%p254) target = $region12
      $region11: #{tpu_custom_call.1} parent=5 // pred_region
        %s258 = ssub.s32 %s19, 1
        // Predicated region
        $region13: #{tpu_custom_call.1} parent=11 // pred_check
          %p259 = pneg %p92
        $region14: #{tpu_custom_call.1} parent=11 // pred_check_branch
          %261 = sbr.rel (%p259) target = $region16
        $region15: #{tpu_custom_call.1} parent=11 // pred_region
          _
        $region16: #{tpu_custom_call.1} parent=11 // pred_fallthru
          _
        // Predicated region
        $region17: #{tpu_custom_call.1} parent=11 // pred_check
          %p262 = pneg %p113
        $region18: #{tpu_custom_call.1} parent=11 // pred_check_branch
          %264 = sbr.rel (%p262) target = $region20
        $region19: #{tpu_custom_call.1} parent=11 // pred_region
          _
        $region20: #{tpu_custom_call.1} parent=11 // pred_fallthru
          _
        // Predicated region
        $region21: #{tpu_custom_call.1} parent=11 // pred_check
          %p265 = pneg %p134
        $region22: #{tpu_custom_call.1} parent=11 // pred_check_branch
          %267 = sbr.rel (%p265) target = $region24
        $region23: #{tpu_custom_call.1} parent=11 // pred_region
          _
        $region24: #{tpu_custom_call.1} parent=11 // pred_fallthru
          _
        // Predicated region
        $region25: #{tpu_custom_call.1} parent=11 // pred_check
          %p268 = pneg %p155
        $region26: #{tpu_custom_call.1} parent=11 // pred_check_branch
          %270 = sbr.rel (%p268) target = $region28
        $region27: #{tpu_custom_call.1} parent=11 // pred_region
          _
        $region28: #{tpu_custom_call.1} parent=11 // pred_fallthru
          _
        // Predicated region
        $region29: #{tpu_custom_call.1} parent=11 // pred_check
          %p271 = pneg %p176
        $region30: #{tpu_custom_call.1} parent=11 // pred_check_branch
          %273 = sbr.rel (%p271) target = $region32
        $region31: #{tpu_custom_call.1} parent=11 // pred_region
          _
        $region32: #{tpu_custom_call.1} parent=11 // pred_fallthru
          _
        // Predicated region
        $region33: #{tpu_custom_call.1} parent=11 // pred_check
          %p274 = pneg %p197
        $region34: #{tpu_custom_call.1} parent=11 // pred_check_branch
          %276 = sbr.rel (%p274) target = $region36
        $region35: #{tpu_custom_call.1} parent=11 // pred_region
          %278 = vsyncadd [#allocation3], 0
          %s279 = sshll.u32 %s7, 4
          %s280 = int_to_ptr.hbm [resolvable:$true] %s279
          %s281 = sshll.u32 [#allocation2], 4
          %s282 = int_to_ptr.vmem [resolvable:$true] %s281
          %287 = dma.hbm_to_vmem [thread:$0]  %s280, 2048, %s282, [#allocation3], 128, 128, 8
        $region36: #{tpu_custom_call.1} parent=11 // pred_fallthru
          _
        // Predicated region
        $region37: #{tpu_custom_call.1} parent=11 // pred_check
          %p288 = pneg %p218
        $region38: #{tpu_custom_call.1} parent=11 // pred_check_branch
          %290 = sbr.rel (%p288) target = $region40
        $region39: #{tpu_custom_call.1} parent=11 // pred_region
          _
        $region40: #{tpu_custom_call.1} parent=11 // pred_fallthru
          _
      $region12: #{tpu_custom_call.1} parent=5 // pred_fallthru
        _
      %p291 = scmp.lt.s32.totalorder %s19, 2
      // Predicated region
      $region41: #{tpu_custom_call.1} parent=5 // pred_check
        %p292 = pneg %p291
      $region42: #{tpu_custom_call.1} parent=5 // pred_check_branch
        %294 = sbr.rel (%p292) target = $region44
      $region43: #{tpu_custom_call.1} parent=5 // pred_region
        // Predicated region
        $region45: #{tpu_custom_call.1} parent=43 // pred_check
          %p295 = pneg %p39
        $region46: #{tpu_custom_call.1} parent=43 // pred_check_branch
          %297 = sbr.rel (%p295) target = $region48
        $region47: #{tpu_custom_call.1} parent=43 // pred_region
          %s298 = smul.u32 4, %s19
          %p299 = scmp.lt.s32.totalorder %s298, 7
          %s300 = scalar_select %p299, %s298, 7
          %s301 = smul.addr %s300, 8
          %s302 = scalar_lea.vmem %s0, %s301
          %s303 = smul.u32 4, %s19
        $region48: #{tpu_custom_call.1} parent=43 // pred_fallthru
          _
        // Predicated region
        $region49: #{tpu_custom_call.1} parent=43 // pred_check
          %p304 = pneg %p65
        $region50: #{tpu_custom_call.1} parent=43 // pred_check_branch
          %306 = sbr.rel (%p304) target = $region52
        $region51: #{tpu_custom_call.1} parent=43 // pred_region
          %s307 = smul.u32 4, %s19
          %p308 = scmp.lt.s32.totalorder %s307, 7
          %s309 = scalar_select %p308, %s307, 7
          %s310 = smul.addr %s309, 8
          %s311 = scalar_lea.vmem %s1, %s310
          %s312 = smul.u32 4, %s19
        $region52: #{tpu_custom_call.1} parent=43 // pred_fallthru
          _
      $region44: #{tpu_custom_call.1} parent=5 // pred_fallthru
        _
      %p313 = scmp.le.s32.totalorder 1, %s19
      %p314 = scmp.lt.s32.totalorder %s19, 3
      %p315 = pnand %p313, %p314
      %p316 = pneg %p315
      // Predicated region
      $region53: #{tpu_custom_call.1} parent=5 // pred_check
        _
      $region54: #{tpu_custom_call.1} parent=5 // pred_check_branch
        %318 = sbr.rel (%p315) target = $region56
      $region55: #{tpu_custom_call.1} parent=5 // pred_region
        %s319 = ssub.s32 %s19, 1
        // Predicated region
        $region57: #{tpu_custom_call.1} parent=55 // pred_check
          %p320 = pneg %p197
        $region58: #{tpu_custom_call.1} parent=55 // pred_check_branch
          %322 = sbr.rel (%p320) target = $region60
        $region59: #{tpu_custom_call.1} parent=55 // pred_region
          %324 = dma.done [#allocation3], 2048
        $region60: #{tpu_custom_call.1} parent=55 // pred_fallthru
          _
        %s325 = smul.u32 4, %s24
        %p326 = scmp.lt.s32.totalorder %s325, 7
        %s327 = scalar_select %p326, %s325, 7
        %s328 = smul.addr %s327, 8
        %s329 = scalar_lea.vmem %s0, %s328
        %p330 = pneg %p45
        %p331 = pneg %p42
        %s332 = smul.u32 4, %s24
        %p333 = scmp.lt.s32.totalorder %s332, 7
        %s334 = scalar_select %p333, %s332, 7
        %s335 = smul.addr %s334, 8
        %s336 = scalar_lea.vmem %s1, %s335
        %p337 = pneg %p71
        %p338 = pneg %p68
        %p339 = pneg %p92
        %p340 = pneg %p89
        %p341 = pneg %p113
        %p342 = pneg %p110
        %p343 = pneg %p134
        %p344 = pneg %p131
        %p345 = pneg %p155
        %p346 = pneg %p152
        %p347 = pneg %p176
        %p348 = pneg %p173
        %p349 = pneg %p197
        %p350 = pneg %p194
        %p351 = pneg %p218
        %p352 = pneg %p215
        %p353 = pneg %p244
        %p354 = pneg %p241
        %s355 = sand.u32 %s231, 1
        %s356 = scalar_lea.sflag [#allocation4], %s355
        %s357 = sand.u32 %s231, 1
        %s358 = smul.addr %s357, 32
        %s359 = scalar_lea.vmem [#allocation5], %s358
        %s360 = smul.u32 4, %s24
        %p361 = scmp.lt.s32.totalorder %s360, 7
        %s362 = scalar_select %p361, %s360, 7
        %s363 = smul.addr %s362, 8
        %s364 = scalar_lea.vmem %s0, %s363
        %s365 = smul.u32 4, %s24
        %s366 = smul.u32 4, %s24
        %p367 = scmp.lt.s32.totalorder %s366, 7
        %s368 = scalar_select %p367, %s366, 7
        %s369 = smul.addr %s368, 8
        %s370 = scalar_lea.vmem %s1, %s369
        %s371 = smul.u32 4, %s24
        %s372 = smul.u32 4, %s24
        %v373 = vld [vmem:[%s364] sm:$0xff]
        %v374 = vld [vmem:[%s364 + $0x8] sm:$0xff]
        %v375 = vld [vmem:[%s364 + $0x10] sm:$0xff]
        %v376 = vld [vmem:[%s364 + $0x18] sm:$0xff]
        %v377 = vld [vmem:[%s2] sm:$0xff]
        %v378 = vld [vmem:[%s2 + $0x8] sm:$0xff]
        %v379 = vld [vmem:[%s370] sm:$0xff]
        %v380 = vld [vmem:[%s370 + $0x8] sm:$0xff]
        %v381 = vld [vmem:[%s370 + $0x10] sm:$0xff]
        %v382 = vld [vmem:[%s370 + $0x18] sm:$0xff]
        %v383 = vld [vmem:[%s3] sm:$0xff]
        %v384 = vld [vmem:[%s3 + $0x8] sm:$0xff]
        %vm385 = vcmask 130048
        %v387 = vsel %vm385, %v379, 0
        %v390 = vsel %vm385, %v380, 0
        %v393 = vsel %vm385, %v381, 0
        %v396 = vsel %vm385, %v382, 0
        %398 = vmatpush.msra.mxu0 0.0
        %399 = vmatpush.msra.mxu0 0.0
        %400 = vmatpush.msra.mxu0 0.0
        %401 = vmatpush.msra.mxu0 0.0
        %402 = vmatpush.msra.mxu0 0.0
        %403 = vmatpush.msra.mxu0 0.0
        %404 = vmatpush.msra.mxu0 0.0
        %405 = vmatpush.msra.mxu0 0.0
        %406 = vmatpush.msra.mxu0 0.0
        %407 = vmatpush.msra.mxu0 0.0
        %408 = vmatpush.msra.mxu0 0.0
        %409 = vmatpush.msra.mxu0 0.0
        %410 = vmatpush.msra.mxu0 0.0
        %411 = vmatpush.msra.mxu0 0.0
        %412 = vmatpush.msra.mxu0 %v384
        %413 = vmatpush.msra.mxu0 %v383
        %414 = vmatmul.f32.gmra.mxu0 %v387
        %v415 = vpop.f32.mrf.mxu0
        %v416 = vadd.f32 0.0, %v415
        %417 = vmatmul.f32.gmra.mxu0 %v390
        %v418 = vpop.f32.mrf.mxu0
        %v419 = vadd.f32 0.0, %v418
        %420 = vmatmul.f32.gmra.mxu0 %v393
        %v421 = vpop.f32.mrf.mxu0
        %v422 = vadd.f32 0.0, %v421
        %423 = vmatmul.f32.gmra.mxu0 %v396
        %v424 = vpop.f32.mrf.mxu0
        %v425 = vadd.f32 0.0, %v424
        %426 = vdwg.mxu0
        %v428 = vsel %vm385, %v373, 0
        %v431 = vsel %vm385, %v374, 0
        %v434 = vsel %vm385, %v375, 0
        %v437 = vsel %vm385, %v376, 0
        %439 = vmatpush.msra.mxu0 0.0
        %440 = vmatpush.msra.mxu0 0.0
        %441 = vmatpush.msra.mxu0 0.0
        %442 = vmatpush.msra.mxu0 0.0
        %443 = vmatpush.msra.mxu0 0.0
        %444 = vmatpush.msra.mxu0 0.0
        %445 = vmatpush.msra.mxu0 0.0
        %446 = vmatpush.msra.mxu0 0.0
        %447 = vmatpush.msra.mxu0 0.0
        %448 = vmatpush.msra.mxu0 0.0
        %449 = vmatpush.msra.mxu0 0.0
        %450 = vmatpush.msra.mxu0 0.0
        %451 = vmatpush.msra.mxu0 0.0
        %452 = vmatpush.msra.mxu0 0.0
        %453 = vmatpush.msra.mxu0 %v378
        %454 = vmatpush.msra.mxu0 %v377
        %455 = vmatmul.f32.gmra.mxu0 %v428
        %v456 = vpop.f32.mrf.mxu0
        %v457 = vadd.f32 %v416, %v456
        %458 = vmatmul.f32.gmra.mxu0 %v431
        %v459 = vpop.f32.mrf.mxu0
        %v460 = vadd.f32 %v419, %v459
        %461 = vmatmul.f32.gmra.mxu0 %v434
        %v462 = vpop.f32.mrf.mxu0
        %v463 = vadd.f32 %v422, %v462
        %464 = vmatmul.f32.gmra.mxu0 %v437
        %v465 = vpop.f32.mrf.mxu0
        %v466 = vadd.f32 %v425, %v465
        %467 = vdwg.mxu0
        %v468 = vld [vmem:[%s4] sm:$0x1]
        %v470 = vperm.slane %v468, 0
        %v472 = vadd.f32 %v457, %v470
        %v473 = vadd.f32 %v460, %v470
        %v474 = vadd.f32 %v463, %v470
        %v475 = vadd.f32 %v466, %v470
        %vm476 = vcmp.gt.f32.partialorder %v472, 0.0
        %vm477 = vcmp.gt.f32.partialorder %v473, 0.0
        %vm478 = vcmp.gt.f32.partialorder %v474, 0.0
        %vm479 = vcmp.gt.f32.partialorder %v475, 0.0
        %v480 = vmul.f32 %v472, 0.01
        %v481 = vmul.f32 %v473, 0.01
        %v482 = vmul.f32 %v474, 0.01
        %v483 = vmul.f32 %v475, 0.01
        %v484 = vsel %vm476, %v472, %v480
        %v485 = vsel %vm477, %v473, %v481
        %v486 = vsel %vm478, %v474, %v482
        %v487 = vsel %vm479, %v475, %v483
        %v488 = vld [vmem:[%s5] sm:$0xff]
        %v489 = vld [vmem:[%s5 + $0x8] sm:$0xff]
        %v490 = vld [vmem:[%s5 + $0x10] sm:$0xff]
        %v491 = vld [vmem:[%s5 + $0x18] sm:$0xff]
        %v492 = vld [vmem:[%s5 + $0x20] sm:$0xff]
        %v493 = vld [vmem:[%s5 + $0x28] sm:$0xff]
        %v494 = vld [vmem:[%s5 + $0x30] sm:$0xff]
        %v495 = vld [vmem:[%s5 + $0x38] sm:$0xff]
        %v496 = vld [vmem:[%s5 + $0x40] sm:$0xff]
        %v497 = vld [vmem:[%s5 + $0x48] sm:$0xff]
        %v498 = vld [vmem:[%s5 + $0x50] sm:$0xff]
        %v499 = vld [vmem:[%s5 + $0x58] sm:$0xff]
        %v500 = vld [vmem:[%s5 + $0x60] sm:$0xff]
        %v501 = vld [vmem:[%s5 + $0x68] sm:$0xff]
        %v502 = vld [vmem:[%s5 + $0x70] sm:$0xff]
        %v503 = vld [vmem:[%s5 + $0x78] sm:$0xff]
        %v504 = vld [vmem:[%s6] sm:$0x1]
        %v506 = vperm.slane %v504, 0
        %508 = vmatpush.msra.mxu0 %v503
        %509 = vmatpush.msra.mxu0 %v502
        %510 = vmatpush.msra.mxu0 %v501
        %511 = vmatpush.msra.mxu0 %v500
        %512 = vmatpush.msra.mxu0 %v499
        %513 = vmatpush.msra.mxu0 %v498
        %514 = vmatpush.msra.mxu0 %v497
        %515 = vmatpush.msra.mxu0 %v496
        %516 = vmatpush.msra.mxu0 %v495
        %517 = vmatpush.msra.mxu0 %v494
        %518 = vmatpush.msra.mxu0 %v493
        %519 = vmatpush.msra.mxu0 %v492
        %520 = vmatpush.msra.mxu0 %v491
        %521 = vmatpush.msra.mxu0 %v490
        %522 = vmatpush.msra.mxu0 %v489
        %523 = vmatpush.msra.mxu0 %v488
        %524 = vmatmul.f32.gmra.mxu0 %v484
        %v525 = vpop.f32.mrf.mxu0
        %v526 = vadd.f32 %v506, %v525
        %527 = vmatmul.f32.gmra.mxu0 %v485
        %v528 = vpop.f32.mrf.mxu0
        %v529 = vadd.f32 %v506, %v528
        %530 = vmatmul.f32.gmra.mxu0 %v486
        %v531 = vpop.f32.mrf.mxu0
        %v532 = vadd.f32 %v506, %v531
        %533 = vmatmul.f32.gmra.mxu0 %v487
        %v534 = vpop.f32.mrf.mxu0
        %v535 = vadd.f32 %v506, %v534
        %536 = vdwg.mxu0
        %vm537 = vcmp.gt.f32.partialorder %v526, 0.0
        %vm538 = vcmp.gt.f32.partialorder %v529, 0.0
        %vm539 = vcmp.gt.f32.partialorder %v532, 0.0
        %vm540 = vcmp.gt.f32.partialorder %v535, 0.0
        %v541 = vmul.f32 %v526, 0.01
        %v542 = vmul.f32 %v529, 0.01
        %v543 = vmul.f32 %v532, 0.01
        %v544 = vmul.f32 %v535, 0.01
        %v545 = vsel %vm537, %v526, %v541
        %v546 = vsel %vm538, %v529, %v542
        %v547 = vsel %vm539, %v532, %v543
        %v548 = vsel %vm540, %v535, %v544
        %v549 = vld [vmem:[#allocation2] sm:$0xff]
        %v550 = vld [vmem:[#allocation2 + $0x8] sm:$0xff]
        %v551 = vld [vmem:[#allocation2 + $0x10] sm:$0xff]
        %v552 = vld [vmem:[#allocation2 + $0x18] sm:$0xff]
        %v553 = vld [vmem:[#allocation2 + $0x20] sm:$0xff]
        %v554 = vld [vmem:[#allocation2 + $0x28] sm:$0xff]
        %v555 = vld [vmem:[#allocation2 + $0x30] sm:$0xff]
        %v556 = vld [vmem:[#allocation2 + $0x38] sm:$0xff]
        %v557 = vld [vmem:[#allocation2 + $0x40] sm:$0xff]
        %v558 = vld [vmem:[#allocation2 + $0x48] sm:$0xff]
        %v559 = vld [vmem:[#allocation2 + $0x50] sm:$0xff]
        %v560 = vld [vmem:[#allocation2 + $0x58] sm:$0xff]
        %v561 = vld [vmem:[#allocation2 + $0x60] sm:$0xff]
        %v562 = vld [vmem:[#allocation2 + $0x68] sm:$0xff]
        %v563 = vld [vmem:[#allocation2 + $0x70] sm:$0xff]
        %v564 = vld [vmem:[#allocation2 + $0x78] sm:$0xff]
        %v565 = vld [vmem:[%s8] sm:$0x1]
        %v567 = vperm.slane %v565, 0
        %569 = vmatpush.msra.mxu0 %v564
        %570 = vmatpush.msra.mxu0 %v563
        %571 = vmatpush.msra.mxu0 %v562
        %572 = vmatpush.msra.mxu0 %v561
        %573 = vmatpush.msra.mxu0 %v560
        %574 = vmatpush.msra.mxu0 %v559
        %575 = vmatpush.msra.mxu0 %v558
        %576 = vmatpush.msra.mxu0 %v557
        %577 = vmatpush.msra.mxu0 %v556
        %578 = vmatpush.msra.mxu0 %v555
        %579 = vmatpush.msra.mxu0 %v554
        %580 = vmatpush.msra.mxu0 %v553
        %581 = vmatpush.msra.mxu0 %v552
        %582 = vmatpush.msra.mxu0 %v551
        %583 = vmatpush.msra.mxu0 %v550
        %584 = vmatpush.msra.mxu0 %v549
        %585 = vmatmul.f32.gmra.mxu0 %v545
        %v586 = vpop.f32.mrf.mxu0
        %v587 = vadd.f32 %v567, %v586
        %588 = vmatmul.f32.gmra.mxu0 %v546
        %v589 = vpop.f32.mrf.mxu0
        %v590 = vadd.f32 %v567, %v589
        %591 = vmatmul.f32.gmra.mxu0 %v547
        %v592 = vpop.f32.mrf.mxu0
        %v593 = vadd.f32 %v567, %v592
        %594 = vmatmul.f32.gmra.mxu0 %v548
        %v595 = vpop.f32.mrf.mxu0
        %v596 = vadd.f32 %v567, %v595
        %597 = vdwg.mxu0
        %598 = vst [vmem:[%s359] sm:$0xff] %v587
        %599 = vst [vmem:[%s359 + $0x8] sm:$0xff] %v590
        %600 = vst [vmem:[%s359 + $0x10] sm:$0xff] %v593
        %601 = vst [vmem:[%s359 + $0x18] sm:$0xff] %v596
        %s602 = sand.u32 %s231, 1
        %s603 = scalar_lea.sflag [#allocation4], %s602
        %s604 = sand.u32 %s231, 1
        %s605 = smul.addr %s604, 32
        %s606 = scalar_lea.vmem [#allocation5], %s605
        // Predicated region
        $region61: #{tpu_custom_call.1} parent=55 // pred_check
          %p607 = pneg %p241
        $region62: #{tpu_custom_call.1} parent=55 // pred_check_branch
          %609 = sbr.rel (%p607) target = $region64
        $region63: #{tpu_custom_call.1} parent=55 // pred_region
          %s610 = smul.u32 4, %s24
          %612 = vsyncadd %s603, 0
          %s613 = smul.addr %s610, 8
          %s614 = scalar_lea.hbm %s9, %s613
          %s615 = sshll.u32 %s606, 4
          %s616 = int_to_ptr.vmem [resolvable:$true] %s615
          %s617 = sshll.u32 %s614, 4
          %s618 = int_to_ptr.hbm [resolvable:$true] %s617
          %623 = dma.vmem_to_hbm [thread:$0]  %s616, 512, %s618, %s603, 128, 128, 8
        $region64: #{tpu_custom_call.1} parent=55 // pred_fallthru
          _
      $region56: #{tpu_custom_call.1} parent=5 // pred_fallthru
        _
      %p624 = scmp.le.s32.totalorder 2, %s19
      // Predicated region
      $region65: #{tpu_custom_call.1} parent=5 // pred_check
        %p625 = pneg %p624
      $region66: #{tpu_custom_call.1} parent=5 // pred_check_branch
        %627 = sbr.rel (%p625) target = $region68
      $region67: #{tpu_custom_call.1} parent=5 // pred_region
        %s628 = ssub.s32 %s19, 2
        // Predicated region
        $region69: #{tpu_custom_call.1} parent=67 // pred_check
          %p629 = pneg %p247
        $region70: #{tpu_custom_call.1} parent=67 // pred_check_branch
          %631 = sbr.rel (%p629) target = $region72
        $region71: #{tpu_custom_call.1} parent=67 // pred_region
          %s632 = sand.u32 %s232, 1
          %s633 = scalar_lea.sflag [#allocation4], %s632
          %s634 = sand.u32 %s232, 1
          %s635 = smul.addr %s634, 32
          %s636 = scalar_lea.vmem [#allocation5], %s635
          %638 = dma.done %s633, 512
        $region72: #{tpu_custom_call.1} parent=67 // pred_fallthru
          _
      $region68: #{tpu_custom_call.1} parent=5 // pred_fallthru
        _
    $region6: #{tpu_custom_call.1} parent=1 // loop_footer
      %s23 = sadd.s32 1, %s19
    $region7: #{tpu_custom_call.1} parent=1 // loop_footer_branch
      %18 = sbr.rel target = $region3
    $region8: #{tpu_custom_call.1} parent=1 // loop_exit
      _
    %639 = vsyncpa [#allocation3], 1
    %s640 = scalar_lea.sflag [#allocation3], 1
    %641 = vsyncpa %s640, 1
    %642 = vsyncpa [#allocation4], 1
    %s643 = scalar_lea.sflag [#allocation4], 1
    %644 = vsyncpa %s643, 1

</llo_original>
